<compile_context>
chip_gen: v7x
topology: tpu7x:2x2x1
jax: 0.10.0
libtpu: 0.0.40
codegen_flags: <defaults>
</compile_context>

<pallas_src>
import jax
import jax.numpy as jnp
from jax.experimental import pallas as pl
from jax.experimental.pallas import tpu as pltpu


# ----------------------------------------------------------------------------
# Kernel
# ----------------------------------------------------------------------------
def _make_mlp_kernel(n_layers, in_dim, compute_dtype):
    """Kernel for an MLP with `n_layers` Linear layers, features-major layout.

    Ref order: (x_ref, w0, b0, w1, b1, ..., w_{L-1}, b_{L-1}, o_ref)
    x_ref tile: [in_dim, B]; w_i: [out_i, in_i]; b_i: [out_i, 1].
    tanh after every layer except the last (matches MhdNet.forward).
    """

    def kernel(*refs):
        x_ref = refs[0]
        o_ref = refs[-1]
        p = refs[1:-1]

        x = x_ref[...].astype(jnp.float32)                    # [in_dim, B] (batch on lanes)
        w0 = p[0][...].astype(jnp.float32)                    # [out0, in_dim]
        b0 = p[1][...].astype(jnp.float32)                    # [out0, 1]

        if in_dim <= 4:
            # Tiny contraction (K = 2): keep it off the MXU — broadcasted VPU FMAs.
            z = b0
            for k in range(in_dim):
                z = z + w0[:, k:k + 1] * x[k:k + 1, :]        # [out0, B]
        else:
            z = jnp.dot(w0, x, preferred_element_type=jnp.float32) + b0

        for i in range(1, n_layers):
            h = jnp.tanh(z.astype(compute_dtype))             # EUP; bf16 on v6e/v7x
            w = p[2 * i][...].astype(compute_dtype)           # MXU operand dtype
            b = p[2 * i + 1][...].astype(jnp.float32)
            z = jnp.dot(w, h, preferred_element_type=jnp.float32) + b

        # [out_dim, B] lane-dense store; masked automatically on the ragged last block.
        o_ref[...] = z.astype(o_ref.dtype)

    return kernel


# ----------------------------------------------------------------------------
# Chip-dependent defaults
# ----------------------------------------------------------------------------
def _device_kind():
    try:
        return jax.devices()[0].device_kind.lower()
    except Exception:
        return ""


def default_compute_dtype():
    """bf16 tanh / MXU operands on bf16-native chips (v6e/v7x); f32 on v5e & older."""
    kind = _device_kind()
    if any(tag in kind for tag in ("v6", "v7", "7x")):
        return jnp.bfloat16
    return jnp.float32


def _default_dim_semantics():
    """CORE_PARALLEL on v7x (2 TCs/chip) so batch tiles actually split across cores."""
    kind = _device_kind()
    if ("v7" in kind) or ("7x" in kind):
        return (pltpu.CORE_PARALLEL,)
    return ("parallel",)


# ----------------------------------------------------------------------------
# Wrapper
# ----------------------------------------------------------------------------
def mhdnet_forward(x, weights, biases, *, block_b=1024, compute_dtype=None):
    """Fused MLP forward.

    x:       [N, in_dim] float32
    weights: list of [out_i, in_i]   (torch nn.Linear layout)
    biases:  list of [out_i, 1]
    returns: [N, out_dim]
    """
    n_layers = len(weights)
    N, in_dim = x.shape
    out_dim = weights[-1].shape[0]

    # Batch lives on the lane axis -> tile must be a multiple of 128.
    assert block_b % 128 == 0, "block_b must be a multiple of the 128-lane width"
    n_blocks = pl.cdiv(N, block_b)   # ragged last block: padded reads, masked store

    if compute_dtype is None:
        compute_dtype = default_compute_dtype()

    # Transpose to [in_dim, N] (features x batch).  No pad, no output slice.
    xt = x.T

    in_specs = [pl.BlockSpec((in_dim, block_b), lambda i: (0, i))]
    params = []
    for w, b in zip(weights, biases):
        # Full (untiled) blocks with constant index_map: resident across the grid.
        in_specs.append(pl.BlockSpec(w.shape, lambda i: (0, 0)))
        in_specs.append(pl.BlockSpec(b.shape, lambda i: (0, 0)))
        params.append(w)
        params.append(b)
    out_spec = pl.BlockSpec((out_dim, block_b), lambda i: (0, i))

    # Advisory cost hint so XLA schedules the custom call sensibly.
    param_bytes = sum(w.size + b.size for w, b in zip(weights, biases)) * 4
    cost = pl.CostEstimate(
        flops=2 * N * sum(int(w.shape[0]) * int(w.shape[1]) for w in weights),
        transcendentals=N * sum(int(w.shape[0]) for w in weights[:-1]),
        bytes_accessed=4 * N * (in_dim + out_dim) + param_bytes,
    )

    def run(dim_sem, cdt):
        return pl.pallas_call(
            _make_mlp_kernel(n_layers, in_dim, cdt),
            out_shape=jax.ShapeDtypeStruct((out_dim, N), x.dtype),
            grid=(n_blocks,),
            in_specs=in_specs,
            out_specs=out_spec,
            compiler_params=pltpu.CompilerParams(dimension_semantics=dim_sem),
            cost_estimate=cost,
        )(xt, *params)

    dim_sem = _default_dim_semantics()
    try:
        ut = run(dim_sem, compute_dtype)
    except Exception:
        # Conservative fallback if a chip-specific option (CORE_PARALLEL / bf16)
        # is not supported on this generation.
        if dim_sem == ("parallel",) and compute_dtype == jnp.float32:
            raise
        ut = run(("parallel",), jnp.float32)

    return ut.T   # [N, out_dim]


# ----------------------------------------------------------------------------
# Params / reference
# ----------------------------------------------------------------------------
def init_mhdnet_params(key, layers):
    """Xavier-normal weights (gain=1.0), zero biases — mirrors MhdNet.__init__.

    Weights in torch layout [out, in]; biases as [out, 1] columns so they
    broadcast along the lane (batch) axis inside the kernel.
    """
    weights, biases = [], []
    for i in range(len(layers) - 1):
        fan_in, fan_out = layers[i], layers[i + 1]
        key, sub = jax.random.split(key)
        std = (2.0 / (fan_in + fan_out)) ** 0.5
        weights.append(std * jax.random.normal(sub, (fan_out, fan_in), dtype=jnp.float32))
        biases.append(jnp.zeros((fan_out, 1), dtype=jnp.float32))
    return weights, biases


def mhdnet_forward_ref(x, weights, biases):
    """Pure-JAX f32 reference of MhdNet.forward for verification."""
    h = x
    for i, (w, b) in enumerate(zip(weights, biases)):
        z = h @ w.T + b.T
        h = jnp.tanh(z) if i < len(weights) - 1 else z
    return h


if __name__ == "__main__":
    # PINN input: 2D collocation points (x1, x2); layers = [2, 32, 32, 1]
    layers = [2, 32, 32, 1]
    N = 2500          # NOT a multiple of the tile -> exercises ragged-block masking
    block_b = 1024    # batch tile on lanes; grid = 3 (>= 2 keeps both v7x TCs busy)

    key = jax.random.PRNGKey(0)
    key, xkey = jax.random.split(key)
    x = jax.random.uniform(xkey, (N, layers[0]), dtype=jnp.float32)

    weights, biases = init_mhdnet_params(key, layers)

    u = mhdnet_forward(x, weights, biases, block_b=block_b)
    u = jax.block_until_ready(u)

    u_ref = mhdnet_forward_ref(x, weights, biases)
    assert u.shape == (N, layers[-1])

    # f32 path (v5e & others) must match tightly; bf16 tanh/MXU path (v6e/v7x)
    # is checked loosely against the f32 reference (sanity only).
    if default_compute_dtype() == jnp.float32:
        atol = rtol = 1e-5
    else:
        atol = rtol = 1e-1
    assert jnp.allclose(u, u_ref, atol=atol, rtol=rtol), "mismatch vs reference"

    # TODO(synk): loss_PDE / loss_BC need autograd (u_xx terms + MSE); only forward() is kernelized.
    print("KERNEL_OK")
</pallas_src>

<mosaic_0001>
module attributes {stable_mosaic.version = 11 : i64} {
  func.func @kernel(%arg0: i32, %arg1: memref<2x1024xf32, #tpu.memory_space<vmem>>, %arg2: memref<32x2xf32, #tpu.memory_space<vmem>>, %arg3: memref<32x1xf32, #tpu.memory_space<vmem>>, %arg4: memref<32x32xf32, #tpu.memory_space<vmem>>, %arg5: memref<32x1xf32, #tpu.memory_space<vmem>>, %arg6: memref<1x32xf32, #tpu.memory_space<vmem>>, %arg7: memref<1x1xf32, #tpu.memory_space<vmem>>, %arg8: memref<1x1024xf32, #tpu.memory_space<vmem>>) attributes {dimension_semantics = [#tpu.dimension_semantics<parallel>], iteration_bounds = array<i64: 3>, scalar_prefetch = 0 : i64, scratch_operands = 0 : i64, tpu.core_type = #tpu.core_type<tc>, window_params = [{transform_indices = @transform_0, window_bounds = array<i64: 2, 1024>}, {pipeline_mode = #tpu.pipeline_mode<synchronous>, transform_indices = @transform_1, window_bounds = array<i64: 32, 2>}, {pipeline_mode = #tpu.pipeline_mode<synchronous>, transform_indices = @transform_2, window_bounds = array<i64: 32, 1>}, {pipeline_mode = #tpu.pipeline_mode<synchronous>, transform_indices = @transform_3, window_bounds = array<i64: 32, 32>}, {pipeline_mode = #tpu.pipeline_mode<synchronous>, transform_indices = @transform_4, window_bounds = array<i64: 32, 1>}, {pipeline_mode = #tpu.pipeline_mode<synchronous>, transform_indices = @transform_5, window_bounds = array<i64: 1, 32>}, {pipeline_mode = #tpu.pipeline_mode<synchronous>, transform_indices = @transform_6, window_bounds = array<i64: 1, 1>}, {transform_indices = @transform_7, window_bounds = array<i64: 1, 1024>}]} {
    %c0 = arith.constant 0 : index
    %c0_0 = arith.constant 0 : index
    %0 = vector.load %arg1[%c0, %c0_0] : memref<2x1024xf32, #tpu.memory_space<vmem>>, vector<2x1024xf32>
    %c0_1 = arith.constant 0 : index
    %c0_2 = arith.constant 0 : index
    %1 = vector.load %arg2[%c0_1, %c0_2] : memref<32x2xf32, #tpu.memory_space<vmem>>, vector<32x2xf32>
    %c0_3 = arith.constant 0 : index
    %c0_4 = arith.constant 0 : index
    %2 = vector.load %arg3[%c0_3, %c0_4] : memref<32x1xf32, #tpu.memory_space<vmem>>, vector<32x1xf32>
    %3 = vector.extract_strided_slice %1 {offsets = [0, 0], sizes = [32, 1], strides = [1, 1]} : vector<32x2xf32> to vector<32x1xf32>
    %4 = vector.extract_strided_slice %0 {offsets = [0, 0], sizes = [1, 1024], strides = [1, 1]} : vector<2x1024xf32> to vector<1x1024xf32>
    %5 = vector.broadcast %3 : vector<32x1xf32> to vector<32x1024xf32>
    %6 = vector.broadcast %4 : vector<1x1024xf32> to vector<32x1024xf32>
    %7 = arith.mulf %5, %6 : vector<32x1024xf32>
    %8 = vector.broadcast %2 : vector<32x1xf32> to vector<32x1024xf32>
    %9 = arith.addf %8, %7 : vector<32x1024xf32>
    %10 = vector.extract_strided_slice %1 {offsets = [0, 1], sizes = [32, 1], strides = [1, 1]} : vector<32x2xf32> to vector<32x1xf32>
    %11 = vector.extract_strided_slice %0 {offsets = [1, 0], sizes = [1, 1024], strides = [1, 1]} : vector<2x1024xf32> to vector<1x1024xf32>
    %12 = vector.broadcast %10 : vector<32x1xf32> to vector<32x1024xf32>
    %13 = vector.broadcast %11 : vector<1x1024xf32> to vector<32x1024xf32>
    %14 = arith.mulf %12, %13 : vector<32x1024xf32>
    %15 = arith.addf %9, %14 : vector<32x1024xf32>
    %16 = math.tanh %15 : vector<32x1024xf32>
    %c0_5 = arith.constant 0 : index
    %c0_6 = arith.constant 0 : index
    %17 = vector.load %arg4[%c0_5, %c0_6] : memref<32x32xf32, #tpu.memory_space<vmem>>, vector<32x32xf32>
    %c0_7 = arith.constant 0 : index
    %c0_8 = arith.constant 0 : index
    %18 = vector.load %arg5[%c0_7, %c0_8] : memref<32x1xf32, #tpu.memory_space<vmem>>, vector<32x1xf32>
    %cst = arith.constant dense<0.000000e+00> : vector<32x1024xf32>
    %19 = tpu.matmul %17, %16, %cst {dimension_numbers = #tpu.dot_dimension_numbers<[1], [0], [0], [1], [0, 0, 1, 1], [], []>} : vector<32x32xf32>, vector<32x1024xf32>, vector<32x1024xf32> -> vector<32x1024xf32>
    %20 = vector.broadcast %18 : vector<32x1xf32> to vector<32x1024xf32>
    %21 = arith.addf %19, %20 : vector<32x1024xf32>
    %22 = math.tanh %21 : vector<32x1024xf32>
    %c0_9 = arith.constant 0 : index
    %c0_10 = arith.constant 0 : index
    %23 = vector.load %arg6[%c0_9, %c0_10] : memref<1x32xf32, #tpu.memory_space<vmem>>, vector<1x32xf32>
    %c0_11 = arith.constant 0 : index
    %c0_12 = arith.constant 0 : index
    %24 = vector.load %arg7[%c0_11, %c0_12] : memref<1x1xf32, #tpu.memory_space<vmem>>, vector<1x1xf32>
    %cst_13 = arith.constant dense<0.000000e+00> : vector<1x1024xf32>
    %25 = tpu.matmul %23, %22, %cst_13 {dimension_numbers = #tpu.dot_dimension_numbers<[1], [0], [0], [1], [0, 0, 1, 1], [], []>} : vector<1x32xf32>, vector<32x1024xf32>, vector<1x1024xf32> -> vector<1x1024xf32>
    %26 = vector.broadcast %24 : vector<1x1xf32> to vector<1x1024xf32>
    %27 = arith.addf %25, %26 : vector<1x1024xf32>
    %c0_14 = arith.constant 0 : index
    %c0_15 = arith.constant 0 : index
    %28 = vector.load %arg8[%c0_14, %c0_15] : memref<1x1024xf32, #tpu.memory_space<vmem>>, vector<1x1024xf32>
    tpu.vector_store %arg8[%c0_14, %c0_15], %27 {strides = array<i32>} : memref<1x1024xf32, #tpu.memory_space<vmem>>, vector<1x1024xf32>,
    return
  }
  func.func @transform_0(%arg0: i32) -> (i32, i32) {
    %c0_i32 = arith.constant 0 : i32
    %c0_i32_0 = arith.constant 0 : i32
    return %c0_i32, %arg0 : i32, i32
  }
  func.func @transform_1(%arg0: i32) -> (i32, i32) {
    %c0_i32 = arith.constant 0 : i32
    %c0_i32_0 = arith.constant 0 : i32
    %c0_i32_1 = arith.constant 0 : i32
    return %c0_i32, %c0_i32_0 : i32, i32
  }
  func.func @transform_2(%arg0: i32) -> (i32, i32) {
    %c0_i32 = arith.constant 0 : i32
    %c0_i32_0 = arith.constant 0 : i32
    %c0_i32_1 = arith.constant 0 : i32
    return %c0_i32, %c0_i32_0 : i32, i32
  }
  func.func @transform_3(%arg0: i32) -> (i32, i32) {
    %c0_i32 = arith.constant 0 : i32
    %c0_i32_0 = arith.constant 0 : i32
    %c0_i32_1 = arith.constant 0 : i32
    return %c0_i32, %c0_i32_0 : i32, i32
  }
  func.func @transform_4(%arg0: i32) -> (i32, i32) {
    %c0_i32 = arith.constant 0 : i32
    %c0_i32_0 = arith.constant 0 : i32
    %c0_i32_1 = arith.constant 0 : i32
    return %c0_i32, %c0_i32_0 : i32, i32
  }
  func.func @transform_5(%arg0: i32) -> (i32, i32) {
    %c0_i32 = arith.constant 0 : i32
    %c0_i32_0 = arith.constant 0 : i32
    %c0_i32_1 = arith.constant 0 : i32
    return %c0_i32, %c0_i32_0 : i32, i32
  }
  func.func @transform_6(%arg0: i32) -> (i32, i32) {
    %c0_i32 = arith.constant 0 : i32
    %c0_i32_0 = arith.constant 0 : i32
    %c0_i32_1 = arith.constant 0 : i32
    return %c0_i32, %c0_i32_0 : i32, i32
  }
  func.func @transform_7(%arg0: i32) -> (i32, i32) {
    %c0_i32 = arith.constant 0 : i32
    %c0_i32_0 = arith.constant 0 : i32
    return %c0_i32, %arg0 : i32, i32
  }
}

</mosaic_0001>

<llo_original>
// kernel: tpu_custom_call.1
$region0: #{tpu_custom_call.1}
  #allocation0 [shape = 'u32[]', space=smem, size = 0x4, offset = 0x4, fixed_abs, tag = 'smem constant byte address 0x4 - core index']
  #allocation1 [shape = 'u32[144,128]{1,0:T(1,128)}', space=vmem, size = 0x12000, scoped, tag = 'internal scratch']
  #allocation2 [shape = 'f32[1,1]{1,0:T(1,128)S(1)}', space=vmem, size = 0x200, scoped, tag = 'scoped memory for tpu_custom_call.1']
  %s0 = inlined_call_operand.vmem [shape: f32[2,2500], index: 0, kind: input, shape index: {}]
  %s1 = inlined_call_operand.vmem [shape: f32[32,2], index: 1, kind: input, shape index: {}]
  %s2 = inlined_call_operand.vmem [shape: f32[32,1], index: 2, kind: input, shape index: {}]
  %s3 = inlined_call_operand.vmem [shape: f32[32,32], index: 3, kind: input, shape index: {}]
  %s4 = inlined_call_operand.vmem [shape: f32[32,1], index: 4, kind: input, shape index: {}]
  %s5 = inlined_call_operand.vmem [shape: f32[1,32], index: 5, kind: input, shape index: {}]
  %s6 = inlined_call_operand.<no memory space> [shape: f32[1,1], index: 6, kind: input, shape index: {}]
  %s7 = inlined_call_operand.hbm [shape: f32[1,2500], index: 7, kind: output, shape index: {}]
  %s8 = sld [smem:[#allocation0]]
  $region61: #{tpu_custom_call.1} parent=0
    _
  %s10 = ssub.s32 1, %s8
  %s11 = scalar_select 0, %s10, %s8
  %v12 = vstv %s6
  %13 = vst [vmem:[#allocation2] sm:$0x1] %v12
  $region1: #{tpu_custom_call.1} parent=0
    #allocation3 [shape = 'u8[8192]{0}', space=vmem, size = 0x2000, scoped, tag = 'output window, operand 0']
    #allocation4 [shape = 's32[2]{0}', space=sflag, size = 0x8, scoped, tag = 'scoped memory for tpu_custom_call.1']
    %14 = vsyncpa [#allocation4], 0
    %s15 = scalar_lea.sflag [#allocation4], 1
    %16 = vsyncpa %s15, 0
    loop: start=0, step=1, limit=5
    $region2: #{tpu_custom_call.1} parent=1 // loop_pre_header
      _
    $region3: #{tpu_custom_call.1} parent=1 // loop_header
      %s18 = sphi 0, %s22
      %p19 = scmp.ge.s32.totalorder %s18, 5
      %s28 = sphi 0, %s30
      %s31 = sphi 0, %s28
      %s32 = sphi 0, %s31
      %s48 = sphi 0, %s32
      %s52 = sphi 0, %s52
      %s54 = sphi 0, %s52
      %s55 = sphi 0, %s54
      %s69 = sphi 0, %s55
      %s73 = sphi 0, %s73
      %s75 = sphi 0, %s73
      %s76 = sphi 0, %s75
      %s90 = sphi 0, %s76
      %s94 = sphi 0, %s94
      %s96 = sphi 0, %s94
      %s97 = sphi 0, %s96
      %s111 = sphi 0, %s97
      %s115 = sphi 0, %s115
      %s117 = sphi 0, %s115
      %s118 = sphi 0, %s117
      %s132 = sphi 0, %s118
      %s136 = sphi 0, %s136
      %s138 = sphi 0, %s136
      %s139 = sphi 0, %s138
      %s153 = sphi 0, %s139
      %s157 = sphi 0, %s157
      %s159 = sphi 0, %s157
      %s160 = sphi 0, %s159
      %s174 = sphi 0, %s160
      %s180 = sphi 0, %s182
      %s183 = sphi 0, %s180
      %s184 = sphi 0, %s183
      %s200 = sphi 0, %s184
    $region4: #{tpu_custom_call.1} parent=1 // loop_header_branch
      %21 = sbr.rel (%p19) target = $region8
    $region5: #{tpu_custom_call.1} parent=1 // loop_body
      %s23 = ssub.s32 %s18, 1
      %s24 = ssub.s32 %s18, 2
      %s25 = sadd.s32 %s18, 1
      %s26 = ssub.s32 %s18, %s25
      %p27 = scmp.eq.s32.totalorder %s26, 0
      %s29 = sadd.s32 %s28, 1
      %s30 = scalar_select %p27, %s28, %s29
      %p33 = pneg %p27
      %p34 = scmp.eq.s32.totalorder %s18, 2
      %p35 = por %p33, %p34
      %p36 = scmp.ne.s32.totalorder %s28, %s31
      %p37 = scmp.eq.s32.totalorder %s18, 0
      %p38 = por %p36, %p37
      %p39 = scmp.ne.s32.totalorder %s28, %s31
      %p40 = scmp.eq.s32.totalorder %s23, 2
      %p41 = por %p39, %p40
      %p42 = scmp.ne.s32.totalorder %s31, %s32
      %p43 = scmp.eq.s32.totalorder %s23, 0
      %p44 = por %p42, %p43
      %p45 = scmp.ne.s32.totalorder %s31, %s32
      %p46 = scmp.eq.s32.totalorder %s24, 2
      %p47 = por %p45, %p46
      %p49 = scmp.ne.s32.totalorder %s32, %s48
      %p50 = scmp.eq.s32.totalorder %s24, 0
      %p51 = por %p49, %p50
      %s53 = sadd.s32 %s52, 1
      %p56 = scmp.eq.s32.totalorder %s18, 2
      %p57 = scmp.ne.s32.totalorder %s52, %s54
      %p58 = scmp.eq.s32.totalorder %s18, 0
      %p59 = por %p57, %p58
      %p60 = scmp.ne.s32.totalorder %s52, %s54
      %p61 = scmp.eq.s32.totalorder %s23, 2
      %p62 = por %p60, %p61
      %p63 = scmp.ne.s32.totalorder %s54, %s55
      %p64 = scmp.eq.s32.totalorder %s23, 0
      %p65 = por %p63, %p64
      %p66 = scmp.ne.s32.totalorder %s54, %s55
      %p67 = scmp.eq.s32.totalorder %s24, 2
      %p68 = por %p66, %p67
      %p70 = scmp.ne.s32.totalorder %s55, %s69
      %p71 = scmp.eq.s32.totalorder %s24, 0
      %p72 = por %p70, %p71
      %s74 = sadd.s32 %s73, 1
      %p77 = scmp.eq.s32.totalorder %s18, 2
      %p78 = scmp.ne.s32.totalorder %s73, %s75
      %p79 = scmp.eq.s32.totalorder %s18, 0
      %p80 = por %p78, %p79
      %p81 = scmp.ne.s32.totalorder %s73, %s75
      %p82 = scmp.eq.s32.totalorder %s23, 2
      %p83 = por %p81, %p82
      %p84 = scmp.ne.s32.totalorder %s75, %s76
      %p85 = scmp.eq.s32.totalorder %s23, 0
      %p86 = por %p84, %p85
      %p87 = scmp.ne.s32.totalorder %s75, %s76
      %p88 = scmp.eq.s32.totalorder %s24, 2
      %p89 = por %p87, %p88
      %p91 = scmp.ne.s32.totalorder %s76, %s90
      %p92 = scmp.eq.s32.totalorder %s24, 0
      %p93 = por %p91, %p92
      %s95 = sadd.s32 %s94, 1
      %p98 = scmp.eq.s32.totalorder %s18, 2
      %p99 = scmp.ne.s32.totalorder %s94, %s96
      %p100 = scmp.eq.s32.totalorder %s18, 0
      %p101 = por %p99, %p100
      %p102 = scmp.ne.s32.totalorder %s94, %s96
      %p103 = scmp.eq.s32.totalorder %s23, 2
      %p104 = por %p102, %p103
      %p105 = scmp.ne.s32.totalorder %s96, %s97
      %p106 = scmp.eq.s32.totalorder %s23, 0
      %p107 = por %p105, %p106
      %p108 = scmp.ne.s32.totalorder %s96, %s97
      %p109 = scmp.eq.s32.totalorder %s24, 2
      %p110 = por %p108, %p109
      %p112 = scmp.ne.s32.totalorder %s97, %s111
      %p113 = scmp.eq.s32.totalorder %s24, 0
      %p114 = por %p112, %p113
      %s116 = sadd.s32 %s115, 1
      %p119 = scmp.eq.s32.totalorder %s18, 2
      %p120 = scmp.ne.s32.totalorder %s115, %s117
      %p121 = scmp.eq.s32.totalorder %s18, 0
      %p122 = por %p120, %p121
      %p123 = scmp.ne.s32.totalorder %s115, %s117
      %p124 = scmp.eq.s32.totalorder %s23, 2
      %p125 = por %p123, %p124
      %p126 = scmp.ne.s32.totalorder %s117, %s118
      %p127 = scmp.eq.s32.totalorder %s23, 0
      %p128 = por %p126, %p127
      %p129 = scmp.ne.s32.totalorder %s117, %s118
      %p130 = scmp.eq.s32.totalorder %s24, 2
      %p131 = por %p129, %p130
      %p133 = scmp.ne.s32.totalorder %s118, %s132
      %p134 = scmp.eq.s32.totalorder %s24, 0
      %p135 = por %p133, %p134
      %s137 = sadd.s32 %s136, 1
      %p140 = scmp.eq.s32.totalorder %s18, 2
      %p141 = scmp.ne.s32.totalorder %s136, %s138
      %p142 = scmp.eq.s32.totalorder %s18, 0
      %p143 = por %p141, %p142
      %p144 = scmp.ne.s32.totalorder %s136, %s138
      %p145 = scmp.eq.s32.totalorder %s23, 2
      %p146 = por %p144, %p145
      %p147 = scmp.ne.s32.totalorder %s138, %s139
      %p148 = scmp.eq.s32.totalorder %s23, 0
      %p149 = por %p147, %p148
      %p150 = scmp.ne.s32.totalorder %s138, %s139
      %p151 = scmp.eq.s32.totalorder %s24, 2
      %p152 = por %p150, %p151
      %p154 = scmp.ne.s32.totalorder %s139, %s153
      %p155 = scmp.eq.s32.totalorder %s24, 0
      %p156 = por %p154, %p155
      %s158 = sadd.s32 %s157, 1
      %p161 = scmp.eq.s32.totalorder %s18, 2
      %p162 = scmp.ne.s32.totalorder %s157, %s159
      %p163 = scmp.eq.s32.totalorder %s18, 0
      %p164 = por %p162, %p163
      %p165 = scmp.ne.s32.totalorder %s157, %s159
      %p166 = scmp.eq.s32.totalorder %s23, 2
      %p167 = por %p165, %p166
      %p168 = scmp.ne.s32.totalorder %s159, %s160
      %p169 = scmp.eq.s32.totalorder %s23, 0
      %p170 = por %p168, %p169
      %p171 = scmp.ne.s32.totalorder %s159, %s160
      %p172 = scmp.eq.s32.totalorder %s24, 2
      %p173 = por %p171, %p172
      %p175 = scmp.ne.s32.totalorder %s160, %s174
      %p176 = scmp.eq.s32.totalorder %s24, 0
      %p177 = por %p175, %p176
      %s178 = ssub.s32 %s18, %s25
      %p179 = scmp.eq.s32.totalorder %s178, 0
      %s181 = sadd.s32 %s180, 1
      %s182 = scalar_select %p179, %s180, %s181
      %p185 = pneg %p179
      %p186 = scmp.eq.s32.totalorder %s18, 2
      %p187 = por %p185, %p186
      %p188 = scmp.ne.s32.totalorder %s180, %s183
      %p189 = scmp.eq.s32.totalorder %s18, 0
      %p190 = por %p188, %p189
      %p191 = scmp.ne.s32.totalorder %s180, %s183
      %p192 = scmp.eq.s32.totalorder %s23, 2
      %p193 = por %p191, %p192
      %p194 = scmp.ne.s32.totalorder %s183, %s184
      %p195 = scmp.eq.s32.totalorder %s23, 0
      %p196 = por %p194, %p195
      %p197 = scmp.ne.s32.totalorder %s183, %s184
      %p198 = scmp.eq.s32.totalorder %s24, 2
      %p199 = por %p197, %p198
      %p201 = scmp.ne.s32.totalorder %s184, %s200
      %p202 = scmp.eq.s32.totalorder %s24, 0
      %p203 = por %p201, %p202
      %p204 = scmp.le.s32.totalorder 1, %s18
      %p205 = scmp.lt.s32.totalorder %s18, 4
      %p206 = pnand %p204, %p205
      %p207 = pneg %p206
      // Predicated region
      $region9: #{tpu_custom_call.1} parent=5 // pred_check
        _
      $region10: #{tpu_custom_call.1} parent=5 // pred_check_branch
        %209 = sbr.rel (%p206) target = $region12
      $region11: #{tpu_custom_call.1} parent=5 // pred_region
        %s210 = ssub.s32 %s18, 1
        // Predicated region
        $region13: #{tpu_custom_call.1} parent=11 // pred_check
          %p211 = pneg %p65
        $region14: #{tpu_custom_call.1} parent=11 // pred_check_branch
          %213 = sbr.rel (%p211) target = $region16
        $region15: #{tpu_custom_call.1} parent=11 // pred_region
          _
        $region16: #{tpu_custom_call.1} parent=11 // pred_fallthru
          _
        // Predicated region
        $region17: #{tpu_custom_call.1} parent=11 // pred_check
          %p214 = pneg %p86
        $region18: #{tpu_custom_call.1} parent=11 // pred_check_branch
          %216 = sbr.rel (%p214) target = $region20
        $region19: #{tpu_custom_call.1} parent=11 // pred_region
          _
        $region20: #{tpu_custom_call.1} parent=11 // pred_fallthru
          _
        // Predicated region
        $region21: #{tpu_custom_call.1} parent=11 // pred_check
          %p217 = pneg %p107
        $region22: #{tpu_custom_call.1} parent=11 // pred_check_branch
          %219 = sbr.rel (%p217) target = $region24
        $region23: #{tpu_custom_call.1} parent=11 // pred_region
          _
        $region24: #{tpu_custom_call.1} parent=11 // pred_fallthru
          _
        // Predicated region
        $region25: #{tpu_custom_call.1} parent=11 // pred_check
          %p220 = pneg %p128
        $region26: #{tpu_custom_call.1} parent=11 // pred_check_branch
          %222 = sbr.rel (%p220) target = $region28
        $region27: #{tpu_custom_call.1} parent=11 // pred_region
          _
        $region28: #{tpu_custom_call.1} parent=11 // pred_fallthru
          _
        // Predicated region
        $region29: #{tpu_custom_call.1} parent=11 // pred_check
          %p223 = pneg %p149
        $region30: #{tpu_custom_call.1} parent=11 // pred_check_branch
          %225 = sbr.rel (%p223) target = $region32
        $region31: #{tpu_custom_call.1} parent=11 // pred_region
          _
        $region32: #{tpu_custom_call.1} parent=11 // pred_fallthru
          _
        // Predicated region
        $region33: #{tpu_custom_call.1} parent=11 // pred_check
          %p226 = pneg %p170
        $region34: #{tpu_custom_call.1} parent=11 // pred_check_branch
          %228 = sbr.rel (%p226) target = $region36
        $region35: #{tpu_custom_call.1} parent=11 // pred_region
          _
        $region36: #{tpu_custom_call.1} parent=11 // pred_fallthru
          _
      $region12: #{tpu_custom_call.1} parent=5 // pred_fallthru
        _
      %p229 = scmp.lt.s32.totalorder %s18, 3
      // Predicated region
      $region37: #{tpu_custom_call.1} parent=5 // pred_check
        %p230 = pneg %p229
      $region38: #{tpu_custom_call.1} parent=5 // pred_check_branch
        %232 = sbr.rel (%p230) target = $region40
      $region39: #{tpu_custom_call.1} parent=5 // pred_region
        // Predicated region
        $region41: #{tpu_custom_call.1} parent=39 // pred_check
          %p233 = pneg %p38
        $region42: #{tpu_custom_call.1} parent=39 // pred_check_branch
          %235 = sbr.rel (%p233) target = $region44
        $region43: #{tpu_custom_call.1} parent=39 // pred_region
          %s236 = smul.u32 8, %s18
          %s237 = ssub.s32 20, %s236
          %p238 = scmp.lt.s32.totalorder %s237, 8
          %s239 = scalar_select %p238, %s237, 8
          %s240 = smul.u32 32, %s239
          %p241 = scmp.lt.s32.totalorder %s236, 19
          %s242 = scalar_select %p241, %s236, 19
          %s243 = smul.addr %s242, 2
          %s244 = scalar_lea.vmem %s0, %s243
          %s245 = smul.u32 8, %s18
          %s246 = ssub.s32 20, %s245
          %p247 = scmp.lt.s32.totalorder %s246, 8
          %s248 = scalar_select %p247, %s246, 8
          %s249 = smul.u32 32, %s248
        $region44: #{tpu_custom_call.1} parent=39 // pred_fallthru
          _
      $region40: #{tpu_custom_call.1} parent=5 // pred_fallthru
        _
      %p250 = scmp.le.s32.totalorder 1, %s18
      %p251 = scmp.lt.s32.totalorder %s18, 4
      %p252 = pnand %p250, %p251
      %p253 = pneg %p252
      // Predicated region
      $region45: #{tpu_custom_call.1} parent=5 // pred_check
        _
      $region46: #{tpu_custom_call.1} parent=5 // pred_check_branch
        %255 = sbr.rel (%p252) target = $region48
      $region47: #{tpu_custom_call.1} parent=5 // pred_region
        %s256 = ssub.s32 %s18, 1
        %s257 = smul.u32 8, %s23
        %s258 = ssub.s32 20, %s257
        %p259 = scmp.lt.s32.totalorder %s258, 8
        %s260 = scalar_select %p259, %s258, 8
        %s261 = smul.u32 32, %s260
        %p262 = scmp.lt.s32.totalorder %s257, 19
        %s263 = scalar_select %p262, %s257, 19
        %s264 = smul.addr %s263, 2
        %s265 = scalar_lea.vmem %s0, %s264
        %p266 = pneg %p44
        %p267 = pneg %p41
        %p268 = pneg %p65
        %p269 = pneg %p62
        %p270 = pneg %p86
        %p271 = pneg %p83
        %p272 = pneg %p107
        %p273 = pneg %p104
        %p274 = pneg %p128
        %p275 = pneg %p125
        %p276 = pneg %p149
        %p277 = pneg %p146
        %p278 = pneg %p170
        %p279 = pneg %p167
        %p280 = pneg %p196
        %p281 = pneg %p193
        %s282 = sand.u32 %s183, 1
        %s283 = scalar_lea.sflag [#allocation4], %s282
        %s284 = sand.u32 %s183, 1
        %s285 = smul.addr %s284, 8
        %s286 = scalar_lea.vmem [#allocation3], %s285
        %s287 = smul.u32 8, %s23
        %s288 = ssub.s32 20, %s287
        %p289 = scmp.lt.s32.totalorder %s288, 8
        %s290 = scalar_select %p289, %s288, 8
        %s291 = smul.u32 32, %s290
        %p292 = scmp.lt.s32.totalorder %s287, 19
        %s293 = scalar_select %p292, %s287, 19
        %s294 = smul.addr %s293, 2
        %s295 = scalar_lea.vmem %s0, %s294
        %s296 = smul.u32 8, %s23
        %s297 = ssub.s32 20, %s296
        %p298 = scmp.lt.s32.totalorder %s297, 8
        %s299 = scalar_select %p298, %s297, 8
        %s300 = smul.u32 32, %s299
        %s301 = smul.u32 8, %s23
        %s302 = ssub.s32 20, %s301
        %p303 = scmp.lt.s32.totalorder %s302, 8
        %s304 = scalar_select %p303, %s302, 8
        %s305 = smul.u32 16, %s304
        %v306 = vld [vmem:[%s295] sm:$0xff]
        %v307 = vld [vmem:[%s295 + $0x8] sm:$0xff]
        %v308 = vld [vmem:[%s1] sm:$0xff]
        %v309 = vld [vmem:[%s1 + $0x8] sm:$0xff]
        %v310 = vld [vmem:[%s1 + $0x10] sm:$0xff]
        %v311 = vld [vmem:[%s1 + $0x18] sm:$0xff]
        %v312 = vld [vmem:[%s2] sm:$0xff]
        %v313 = vld [vmem:[%s2 + $0x8] sm:$0xff]
        %v314 = vld [vmem:[%s2 + $0x10] sm:$0xff]
        %v315 = vld [vmem:[%s2 + $0x18] sm:$0xff]
        %317 = vset.pattern.permute.xlu0 0
        %318 = vperm.xlu0 %317, %v308
        %v319 = vpop.permute.xlu0 %318
        %322 = vset.pattern.permute.xlu0 0
        %323 = vperm.xlu0 %322, %v309
        %v324 = vpop.permute.xlu0 %323
        %327 = vset.pattern.permute.xlu0 0
        %328 = vperm.xlu0 %327, %v310
        %v329 = vpop.permute.xlu0 %328
        %332 = vset.pattern.permute.xlu0 0
        %333 = vperm.xlu0 %332, %v311
        %v334 = vpop.permute.xlu0 %333
        %v338 = vlaneseq
        %v339 = vshrl.u32 %v338, 7
        %v340 = vsub.s32 0, %v339
        %v341 = vrot.slane %v306, %v340
        %v342 = vlaneseq
        %v343 = vshrl.u32 %v342, 7
        %v344 = vsub.s32 2, %v343
        %v345 = vrot.slane %v306, %v344
        %v346 = vlaneseq
        %v347 = vshrl.u32 %v346, 7
        %v348 = vsub.s32 4, %v347
        %v349 = vrot.slane %v306, %v348
        %v350 = vlaneseq
        %v351 = vshrl.u32 %v350, 7
        %v352 = vsub.s32 6, %v351
        %v353 = vrot.slane %v306, %v352
        %v354 = vlaneseq
        %v355 = vshrl.u32 %v354, 7
        %v356 = vsub.s32 0, %v355
        %v357 = vrot.slane %v307, %v356
        %v358 = vlaneseq
        %v359 = vshrl.u32 %v358, 7
        %v360 = vsub.s32 2, %v359
        %v361 = vrot.slane %v307, %v360
        %v362 = vlaneseq
        %v363 = vshrl.u32 %v362, 7
        %v364 = vsub.s32 4, %v363
        %v365 = vrot.slane %v307, %v364
        %v366 = vlaneseq
        %v367 = vshrl.u32 %v366, 7
        %v368 = vsub.s32 6, %v367
        %v369 = vrot.slane %v307, %v368
        %v378 = vlaneseq
        %v379 = vshrl.u32 %v378, 7
        %v380 = vsub.s32 0, %v379
        %v381 = vrot.slane %v341, %v380
        %v382 = vlaneseq
        %v383 = vshrl.u32 %v382, 7
        %v384 = vsub.s32 0, %v383
        %v385 = vrot.slane %v345, %v384
        %v386 = vlaneseq
        %v387 = vshrl.u32 %v386, 7
        %v388 = vsub.s32 0, %v387
        %v389 = vrot.slane %v349, %v388
        %v390 = vlaneseq
        %v391 = vshrl.u32 %v390, 7
        %v392 = vsub.s32 0, %v391
        %v393 = vrot.slane %v353, %v392
        %v394 = vlaneseq
        %v395 = vshrl.u32 %v394, 7
        %v396 = vsub.s32 0, %v395
        %v397 = vrot.slane %v357, %v396
        %v398 = vlaneseq
        %v399 = vshrl.u32 %v398, 7
        %v400 = vsub.s32 0, %v399
        %v401 = vrot.slane %v361, %v400
        %v402 = vlaneseq
        %v403 = vshrl.u32 %v402, 7
        %v404 = vsub.s32 0, %v403
        %v405 = vrot.slane %v365, %v404
        %v406 = vlaneseq
        %v407 = vshrl.u32 %v406, 7
        %v408 = vsub.s32 0, %v407
        %v409 = vrot.slane %v369, %v408
        %v410 = vmul.f32 %v319, %v381
        %v411 = vmul.f32 %v319, %v385
        %v412 = vmul.f32 %v319, %v389
        %v413 = vmul.f32 %v319, %v393
        %v414 = vmul.f32 %v319, %v397
        %v415 = vmul.f32 %v319, %v401
        %v416 = vmul.f32 %v319, %v405
        %v417 = vmul.f32 %v319, %v409
        %v418 = vmul.f32 %v324, %v381
        %v419 = vmul.f32 %v324, %v385
        %v420 = vmul.f32 %v324, %v389
        %v421 = vmul.f32 %v324, %v393
        %v422 = vmul.f32 %v324, %v397
        %v423 = vmul.f32 %v324, %v401
        %v424 = vmul.f32 %v324, %v405
        %v425 = vmul.f32 %v324, %v409
        %v426 = vmul.f32 %v329, %v381
        %v427 = vmul.f32 %v329, %v385
        %v428 = vmul.f32 %v329, %v389
        %v429 = vmul.f32 %v329, %v393
        %v430 = vmul.f32 %v329, %v397
        %v431 = vmul.f32 %v329, %v401
        %v432 = vmul.f32 %v329, %v405
        %v433 = vmul.f32 %v329, %v409
        %v434 = vmul.f32 %v334, %v381
        %v435 = vmul.f32 %v334, %v385
        %v436 = vmul.f32 %v334, %v389
        %v437 = vmul.f32 %v334, %v393
        %v438 = vmul.f32 %v334, %v397
        %v439 = vmul.f32 %v334, %v401
        %v440 = vmul.f32 %v334, %v405
        %v441 = vmul.f32 %v334, %v409
        %443 = vset.pattern.permute.xlu0 0
        %444 = vperm.xlu0 %443, %v312
        %v445 = vpop.permute.xlu0 %444
        %448 = vset.pattern.permute.xlu0 0
        %449 = vperm.xlu0 %448, %v313
        %v450 = vpop.permute.xlu0 %449
        %453 = vset.pattern.permute.xlu0 0
        %454 = vperm.xlu0 %453, %v314
        %v455 = vpop.permute.xlu0 %454
        %458 = vset.pattern.permute.xlu0 0
        %459 = vperm.xlu0 %458, %v315
        %v460 = vpop.permute.xlu0 %459
        %v462 = vadd.f32 %v445, %v410
        %v463 = vadd.f32 %v445, %v411
        %v464 = vadd.f32 %v445, %v412
        %v465 = vadd.f32 %v445, %v413
        %v466 = vadd.f32 %v445, %v414
        %v467 = vadd.f32 %v445, %v415
        %v468 = vadd.f32 %v445, %v416
        %v469 = vadd.f32 %v445, %v417
        %v470 = vadd.f32 %v450, %v418
        %v471 = vadd.f32 %v450, %v419
        %v472 = vadd.f32 %v450, %v420
        %v473 = vadd.f32 %v450, %v421
        %v474 = vadd.f32 %v450, %v422
        %v475 = vadd.f32 %v450, %v423
        %v476 = vadd.f32 %v450, %v424
        %v477 = vadd.f32 %v450, %v425
        %v478 = vadd.f32 %v455, %v426
        %v479 = vadd.f32 %v455, %v427
        %v480 = vadd.f32 %v455, %v428
        %v481 = vadd.f32 %v455, %v429
        %v482 = vadd.f32 %v455, %v430
        %v483 = vadd.f32 %v455, %v431
        %v484 = vadd.f32 %v455, %v432
        %v485 = vadd.f32 %v455, %v433
        %v486 = vadd.f32 %v460, %v434
        %v487 = vadd.f32 %v460, %v435
        %v488 = vadd.f32 %v460, %v436
        %v489 = vadd.f32 %v460, %v437
        %v490 = vadd.f32 %v460, %v438
        %v491 = vadd.f32 %v460, %v439
        %v492 = vadd.f32 %v460, %v440
        %v493 = vadd.f32 %v460, %v441
        %494 = vset.pattern.permute.xlu0 1
        %495 = vperm.xlu0 %494, %v308
        %v496 = vpop.permute.xlu0 %495
        %498 = vset.pattern.permute.xlu0 1
        %499 = vperm.xlu0 %498, %v309
        %v500 = vpop.permute.xlu0 %499
        %502 = vset.pattern.permute.xlu0 1
        %503 = vperm.xlu0 %502, %v310
        %v504 = vpop.permute.xlu0 %503
        %506 = vset.pattern.permute.xlu0 1
        %507 = vperm.xlu0 %506, %v311
        %v508 = vpop.permute.xlu0 %507
        %v510 = vlaneseq
        %v511 = vshrl.u32 %v510, 7
        %v512 = vsub.s32 1, %v511
        %v513 = vrot.slane %v306, %v512
        %v514 = vlaneseq
        %v515 = vshrl.u32 %v514, 7
        %v516 = vsub.s32 3, %v515
        %v517 = vrot.slane %v306, %v516
        %v518 = vlaneseq
        %v519 = vshrl.u32 %v518, 7
        %v520 = vsub.s32 5, %v519
        %v521 = vrot.slane %v306, %v520
        %v522 = vlaneseq
        %v523 = vshrl.u32 %v522, 7
        %v524 = vsub.s32 7, %v523
        %v525 = vrot.slane %v306, %v524
        %v526 = vlaneseq
        %v527 = vshrl.u32 %v526, 7
        %v528 = vsub.s32 1, %v527
        %v529 = vrot.slane %v307, %v528
        %v530 = vlaneseq
        %v531 = vshrl.u32 %v530, 7
        %v532 = vsub.s32 3, %v531
        %v533 = vrot.slane %v307, %v532
        %v534 = vlaneseq
        %v535 = vshrl.u32 %v534, 7
        %v536 = vsub.s32 5, %v535
        %v537 = vrot.slane %v307, %v536
        %v538 = vlaneseq
        %v539 = vshrl.u32 %v538, 7
        %v540 = vsub.s32 7, %v539
        %v541 = vrot.slane %v307, %v540
        %v550 = vlaneseq
        %v551 = vshrl.u32 %v550, 7
        %v552 = vsub.s32 1, %v551
        %v553 = vrot.slane %v513, %v552
        %v554 = vlaneseq
        %v555 = vshrl.u32 %v554, 7
        %v556 = vsub.s32 1, %v555
        %v557 = vrot.slane %v517, %v556
        %v558 = vlaneseq
        %v559 = vshrl.u32 %v558, 7
        %v560 = vsub.s32 1, %v559
        %v561 = vrot.slane %v521, %v560
        %v562 = vlaneseq
        %v563 = vshrl.u32 %v562, 7
        %v564 = vsub.s32 1, %v563
        %v565 = vrot.slane %v525, %v564
        %v566 = vlaneseq
        %v567 = vshrl.u32 %v566, 7
        %v568 = vsub.s32 1, %v567
        %v569 = vrot.slane %v529, %v568
        %v570 = vlaneseq
        %v571 = vshrl.u32 %v570, 7
        %v572 = vsub.s32 1, %v571
        %v573 = vrot.slane %v533, %v572
        %v574 = vlaneseq
        %v575 = vshrl.u32 %v574, 7
        %v576 = vsub.s32 1, %v575
        %v577 = vrot.slane %v537, %v576
        %v578 = vlaneseq
        %v579 = vshrl.u32 %v578, 7
        %v580 = vsub.s32 1, %v579
        %v581 = vrot.slane %v541, %v580
        %v582 = vmul.f32 %v496, %v553
        %v583 = vmul.f32 %v496, %v557
        %v584 = vmul.f32 %v496, %v561
        %v585 = vmul.f32 %v496, %v565
        %v586 = vmul.f32 %v496, %v569
        %v587 = vmul.f32 %v496, %v573
        %v588 = vmul.f32 %v496, %v577
        %v589 = vmul.f32 %v496, %v581
        %v590 = vmul.f32 %v500, %v553
        %v591 = vmul.f32 %v500, %v557
        %v592 = vmul.f32 %v500, %v561
        %v593 = vmul.f32 %v500, %v565
        %v594 = vmul.f32 %v500, %v569
        %v595 = vmul.f32 %v500, %v573
        %v596 = vmul.f32 %v500, %v577
        %v597 = vmul.f32 %v500, %v581
        %v598 = vmul.f32 %v504, %v553
        %v599 = vmul.f32 %v504, %v557
        %v600 = vmul.f32 %v504, %v561
        %v601 = vmul.f32 %v504, %v565
        %v602 = vmul.f32 %v504, %v569
        %v603 = vmul.f32 %v504, %v573
        %v604 = vmul.f32 %v504, %v577
        %v605 = vmul.f32 %v504, %v581
        %v606 = vmul.f32 %v508, %v553
        %v607 = vmul.f32 %v508, %v557
        %v608 = vmul.f32 %v508, %v561
        %v609 = vmul.f32 %v508, %v565
        %v610 = vmul.f32 %v508, %v569
        %v611 = vmul.f32 %v508, %v573
        %v612 = vmul.f32 %v508, %v577
        %v613 = vmul.f32 %v508, %v581
        %v614 = vadd.f32 %v462, %v582
        %v615 = vadd.f32 %v463, %v583
        %v616 = vadd.f32 %v464, %v584
        %v617 = vadd.f32 %v465, %v585
        %v618 = vadd.f32 %v466, %v586
        %v619 = vadd.f32 %v467, %v587
        %v620 = vadd.f32 %v468, %v588
        %v621 = vadd.f32 %v469, %v589
        %v622 = vadd.f32 %v470, %v590
        %v623 = vadd.f32 %v471, %v591
        %v624 = vadd.f32 %v472, %v592
        %v625 = vadd.f32 %v473, %v593
        %v626 = vadd.f32 %v474, %v594
        %v627 = vadd.f32 %v475, %v595
        %v628 = vadd.f32 %v476, %v596
        %v629 = vadd.f32 %v477, %v597
        %v630 = vadd.f32 %v478, %v598
        %v631 = vadd.f32 %v479, %v599
        %v632 = vadd.f32 %v480, %v600
        %v633 = vadd.f32 %v481, %v601
        %v634 = vadd.f32 %v482, %v602
        %v635 = vadd.f32 %v483, %v603
        %v636 = vadd.f32 %v484, %v604
        %v637 = vadd.f32 %v485, %v605
        %v638 = vadd.f32 %v486, %v606
        %v639 = vadd.f32 %v487, %v607
        %v640 = vadd.f32 %v488, %v608
        %v641 = vadd.f32 %v489, %v609
        %v642 = vadd.f32 %v490, %v610
        %v643 = vadd.f32 %v491, %v611
        %v644 = vadd.f32 %v492, %v612
        %v645 = vadd.f32 %v493, %v613
        %v646 = vtanh.pop %v614
        %v647 = vtanh.pop %v615
        %v648 = vtanh.pop %v616
        %v649 = vtanh.pop %v617
        %v650 = vtanh.pop %v618
        %v651 = vtanh.pop %v619
        %v652 = vtanh.pop %v620
        %v653 = vtanh.pop %v621
        %v654 = vtanh.pop %v622
        %v655 = vtanh.pop %v623
        %v656 = vtanh.pop %v624
        %v657 = vtanh.pop %v625
        %v658 = vtanh.pop %v626
        %v659 = vtanh.pop %v627
        %v660 = vtanh.pop %v628
        %v661 = vtanh.pop %v629
        %v662 = vtanh.pop %v630
        %v663 = vtanh.pop %v631
        %v664 = vtanh.pop %v632
        %v665 = vtanh.pop %v633
        %v666 = vtanh.pop %v634
        %v667 = vtanh.pop %v635
        %v668 = vtanh.pop %v636
        %v669 = vtanh.pop %v637
        %v670 = vtanh.pop %v638
        %v671 = vtanh.pop %v639
        %v672 = vtanh.pop %v640
        %v673 = vtanh.pop %v641
        %v674 = vtanh.pop %v642
        %v675 = vtanh.pop %v643
        %v676 = vtanh.pop %v644
        %v677 = vtanh.pop %v645
        %v678 = vld [vmem:[%s3] sm:$0xff]
        %v679 = vld [vmem:[%s3 + $0x8] sm:$0xff]
        %v680 = vld [vmem:[%s3 + $0x10] sm:$0xff]
        %v681 = vld [vmem:[%s3 + $0x18] sm:$0xff]
        %v682 = vld [vmem:[%s4] sm:$0xff]
        %v683 = vld [vmem:[%s4 + $0x8] sm:$0xff]
        %v684 = vld [vmem:[%s4 + $0x10] sm:$0xff]
        %v685 = vld [vmem:[%s4 + $0x18] sm:$0xff]
        %687 = vset.pattern.permute.xlu0 0
        %688 = vperm.xlu0 %687, %v682
        %v689 = vpop.permute.xlu0 %688
        %692 = vset.pattern.permute.xlu0 0
        %693 = vperm.xlu0 %692, %v683
        %v694 = vpop.permute.xlu0 %693
        %697 = vset.pattern.permute.xlu0 0
        %698 = vperm.xlu0 %697, %v684
        %v699 = vpop.permute.xlu0 %698
        %702 = vset.pattern.permute.xlu0 0
        %703 = vperm.xlu0 %702, %v685
        %v704 = vpop.permute.xlu0 %703
        %vm706 = vcmask 261120
        %v708 = vsel %vm706, %v678, 0
        %v711 = vsel %vm706, %v679, 0
        %v714 = vsel %vm706, %v680, 0
        %v717 = vsel %vm706, %v681, 0
        %719 = vmatprep.subr.mxu0 %v647
        %720 = vmatpush1.msra.mxu0 %v646
        %721 = vmatprep.subr.mxu0 %v655
        %722 = vmatpush1.msra.mxu0 %v654
        %723 = vmatprep.subr.mxu0 %v663
        %724 = vmatpush1.msra.mxu0 %v662
        %725 = vmatprep.subr.mxu0 %v671
        %726 = vmatpush1.msra.mxu0 %v670
        %727 = vmatprep.subr.mxu0 0.0
        %728 = vmatpush1.msra.mxu0 0.0
        %729 = vmatprep.subr.mxu0 0.0
        %730 = vmatpush1.msra.mxu0 0.0
        %731 = vmatprep.subr.mxu0 0.0
        %732 = vmatpush1.msra.mxu0 0.0
        %733 = vmatprep.subr.mxu0 0.0
        %734 = vmatpush1.msra.mxu0 0.0
        %735 = vmatprep.subr.mxu0 0.0
        %736 = vmatpush1.msra.mxu0 0.0
        %737 = vmatprep.subr.mxu0 0.0
        %738 = vmatpush1.msra.mxu0 0.0
        %739 = vmatprep.subr.mxu0 0.0
        %740 = vmatpush1.msra.mxu0 0.0
        %741 = vmatprep.subr.mxu0 0.0
        %742 = vmatpush1.msra.mxu0 0.0
        %743 = vmatprep.subr.mxu0 0.0
        %744 = vmatpush1.msra.mxu0 0.0
        %745 = vmatprep.subr.mxu0 0.0
        %746 = vmatpush1.msra.mxu0 0.0
        %747 = vmatprep.subr.mxu0 0.0
        %748 = vmatpush1.msra.mxu0 0.0
        %749 = vmatprep.subr.mxu0 0.0
        %750 = vmatpush1.msra.mxu0 0.0
        %751 = vmatprep.subr.mxu0 0.0
        %752 = vmatpush1.msra.mxu0 0.0
        %753 = vmatprep.subr.mxu0 0.0
        %754 = vmatpush1.msra.mxu0 0.0
        %755 = vmatprep.subr.mxu0 0.0
        %756 = vmatpush1.msra.mxu0 0.0
        %757 = vmatprep.subr.mxu0 0.0
        %758 = vmatpush1.msra.mxu0 0.0
        %759 = vmatprep.subr.mxu0 0.0
        %760 = vmatpush1.msra.mxu0 0.0
        %761 = vmatprep.subr.mxu0 0.0
        %762 = vmatpush1.msra.mxu0 0.0
        %763 = vmatprep.subr.mxu0 0.0
        %764 = vmatpush1.msra.mxu0 0.0
        %765 = vmatprep.subr.mxu0 0.0
        %766 = vmatpush1.msra.mxu0 0.0
        %767 = vmatprep.subr.mxu0 0.0
        %768 = vmatpush1.msra.mxu0 0.0
        %769 = vmatprep.subr.mxu0 0.0
        %770 = vmatpush1.msra.mxu0 0.0
        %771 = vmatprep.subr.mxu0 0.0
        %772 = vmatpush1.msra.mxu0 0.0
        %773 = vmatprep.subr.mxu0 0.0
        %774 = vmatpush1.msra.mxu0 0.0
        %775 = vmatprep.subr.mxu0 0.0
        %776 = vmatpush1.msra.mxu0 0.0
        %777 = vmatprep.subr.mxu0 0.0
        %778 = vmatpush1.msra.mxu0 0.0
        %779 = vmatprep.subr.mxu0 0.0
        %780 = vmatpush1.msra.mxu0 0.0
        %781 = vmatprep.subr.mxu0 0.0
        %782 = vmatpush1.msra.mxu0 0.0
        %783 = vmatprep.mubr.f32.mxu0 0.0
        %784 = vmatmul.mubr.f32.gmra.mrb[0].mxu0 %v708
        %v785 = vpop.f32.mrb[0].mxu0
        %v786 = vadd.f32 %v689, %v785
        %v787 = vpop.f32.mrb[0].mxu0
        %v788 = vadd.f32 %v689, %v787
        %789 = vmatprep.mubr.f32.mxu0 0.0
        %790 = vmatmul.mubr.f32.gmra.mrb[0].mxu0 %v711
        %v791 = vpop.f32.mrb[0].mxu0
        %v792 = vadd.f32 %v694, %v791
        %v793 = vpop.f32.mrb[0].mxu0
        %v794 = vadd.f32 %v694, %v793
        %795 = vmatprep.mubr.f32.mxu0 0.0
        %796 = vmatmul.mubr.f32.gmra.mrb[0].mxu0 %v714
        %v797 = vpop.f32.mrb[0].mxu0
        %v798 = vadd.f32 %v699, %v797
        %v799 = vpop.f32.mrb[0].mxu0
        %v800 = vadd.f32 %v699, %v799
        %801 = vmatprep.mubr.f32.mxu0 0.0
        %802 = vmatmul.mubr.f32.gmra.mrb[0].mxu0 %v717
        %v803 = vpop.f32.mrb[0].mxu0
        %v804 = vadd.f32 %v704, %v803
        %v805 = vpop.f32.mrb[0].mxu0
        %v806 = vadd.f32 %v704, %v805
        %807 = vdwg.mxu0
        %808 = vmatprep.subr.mxu0 %v649
        %809 = vmatpush1.msra.mxu0 %v648
        %810 = vmatprep.subr.mxu0 %v657
        %811 = vmatpush1.msra.mxu0 %v656
        %812 = vmatprep.subr.mxu0 %v665
        %813 = vmatpush1.msra.mxu0 %v664
        %814 = vmatprep.subr.mxu0 %v673
        %815 = vmatpush1.msra.mxu0 %v672
        %816 = vmatprep.subr.mxu0 0.0
        %817 = vmatpush1.msra.mxu0 0.0
        %818 = vmatprep.subr.mxu0 0.0
        %819 = vmatpush1.msra.mxu0 0.0
        %820 = vmatprep.subr.mxu0 0.0
        %821 = vmatpush1.msra.mxu0 0.0
        %822 = vmatprep.subr.mxu0 0.0
        %823 = vmatpush1.msra.mxu0 0.0
        %824 = vmatprep.subr.mxu0 0.0
        %825 = vmatpush1.msra.mxu0 0.0
        %826 = vmatprep.subr.mxu0 0.0
        %827 = vmatpush1.msra.mxu0 0.0
        %828 = vmatprep.subr.mxu0 0.0
        %829 = vmatpush1.msra.mxu0 0.0
        %830 = vmatprep.subr.mxu0 0.0
        %831 = vmatpush1.msra.mxu0 0.0
        %832 = vmatprep.subr.mxu0 0.0
        %833 = vmatpush1.msra.mxu0 0.0
        %834 = vmatprep.subr.mxu0 0.0
        %835 = vmatpush1.msra.mxu0 0.0
        %836 = vmatprep.subr.mxu0 0.0
        %837 = vmatpush1.msra.mxu0 0.0
        %838 = vmatprep.subr.mxu0 0.0
        %839 = vmatpush1.msra.mxu0 0.0
        %840 = vmatprep.subr.mxu0 0.0
        %841 = vmatpush1.msra.mxu0 0.0
        %842 = vmatprep.subr.mxu0 0.0
        %843 = vmatpush1.msra.mxu0 0.0
        %844 = vmatprep.subr.mxu0 0.0
        %845 = vmatpush1.msra.mxu0 0.0
        %846 = vmatprep.subr.mxu0 0.0
        %847 = vmatpush1.msra.mxu0 0.0
        %848 = vmatprep.subr.mxu0 0.0
        %849 = vmatpush1.msra.mxu0 0.0
        %850 = vmatprep.subr.mxu0 0.0
        %851 = vmatpush1.msra.mxu0 0.0
        %852 = vmatprep.subr.mxu0 0.0
        %853 = vmatpush1.msra.mxu0 0.0
        %854 = vmatprep.subr.mxu0 0.0
        %855 = vmatpush1.msra.mxu0 0.0
        %856 = vmatprep.subr.mxu0 0.0
        %857 = vmatpush1.msra.mxu0 0.0
        %858 = vmatprep.subr.mxu0 0.0
        %859 = vmatpush1.msra.mxu0 0.0
        %860 = vmatprep.subr.mxu0 0.0
        %861 = vmatpush1.msra.mxu0 0.0
        %862 = vmatprep.subr.mxu0 0.0
        %863 = vmatpush1.msra.mxu0 0.0
        %864 = vmatprep.subr.mxu0 0.0
        %865 = vmatpush1.msra.mxu0 0.0
        %866 = vmatprep.subr.mxu0 0.0
        %867 = vmatpush1.msra.mxu0 0.0
        %868 = vmatprep.subr.mxu0 0.0
        %869 = vmatpush1.msra.mxu0 0.0
        %870 = vmatprep.subr.mxu0 0.0
        %871 = vmatpush1.msra.mxu0 0.0
        %872 = vmatprep.mubr.f32.mxu0 0.0
        %873 = vmatmul.mubr.f32.gmra.mrb[0].mxu0 %v708
        %v874 = vpop.f32.mrb[0].mxu0
        %v875 = vadd.f32 %v689, %v874
        %v876 = vpop.f32.mrb[0].mxu0
        %v877 = vadd.f32 %v689, %v876
        %878 = vmatprep.mubr.f32.mxu0 0.0
        %879 = vmatmul.mubr.f32.gmra.mrb[0].mxu0 %v711
        %v880 = vpop.f32.mrb[0].mxu0
        %v881 = vadd.f32 %v694, %v880
        %v882 = vpop.f32.mrb[0].mxu0
        %v883 = vadd.f32 %v694, %v882
        %884 = vmatprep.mubr.f32.mxu0 0.0
        %885 = vmatmul.mubr.f32.gmra.mrb[0].mxu0 %v714
        %v886 = vpop.f32.mrb[0].mxu0
        %v887 = vadd.f32 %v699, %v886
        %v888 = vpop.f32.mrb[0].mxu0
        %v889 = vadd.f32 %v699, %v888
        %890 = vmatprep.mubr.f32.mxu0 0.0
        %891 = vmatmul.mubr.f32.gmra.mrb[0].mxu0 %v717
        %v892 = vpop.f32.mrb[0].mxu0
        %v893 = vadd.f32 %v704, %v892
        %v894 = vpop.f32.mrb[0].mxu0
        %v895 = vadd.f32 %v704, %v894
        %896 = vdwg.mxu0
        %897 = vmatprep.subr.mxu0 %v651
        %898 = vmatpush1.msra.mxu0 %v650
        %899 = vmatprep.subr.mxu0 %v659
        %900 = vmatpush1.msra.mxu0 %v658
        %901 = vmatprep.subr.mxu0 %v667
        %902 = vmatpush1.msra.mxu0 %v666
        %903 = vmatprep.subr.mxu0 %v675
        %904 = vmatpush1.msra.mxu0 %v674
        %905 = vmatprep.subr.mxu0 0.0
        %906 = vmatpush1.msra.mxu0 0.0
        %907 = vmatprep.subr.mxu0 0.0
        %908 = vmatpush1.msra.mxu0 0.0
        %909 = vmatprep.subr.mxu0 0.0
        %910 = vmatpush1.msra.mxu0 0.0
        %911 = vmatprep.subr.mxu0 0.0
        %912 = vmatpush1.msra.mxu0 0.0
        %913 = vmatprep.subr.mxu0 0.0
        %914 = vmatpush1.msra.mxu0 0.0
        %915 = vmatprep.subr.mxu0 0.0
        %916 = vmatpush1.msra.mxu0 0.0
        %917 = vmatprep.subr.mxu0 0.0
        %918 = vmatpush1.msra.mxu0 0.0
        %919 = vmatprep.subr.mxu0 0.0
        %920 = vmatpush1.msra.mxu0 0.0
        %921 = vmatprep.subr.mxu0 0.0
        %922 = vmatpush1.msra.mxu0 0.0
        %923 = vmatprep.subr.mxu0 0.0
        %924 = vmatpush1.msra.mxu0 0.0
        %925 = vmatprep.subr.mxu0 0.0
        %926 = vmatpush1.msra.mxu0 0.0
        %927 = vmatprep.subr.mxu0 0.0
        %928 = vmatpush1.msra.mxu0 0.0
        %929 = vmatprep.subr.mxu0 0.0
        %930 = vmatpush1.msra.mxu0 0.0
        %931 = vmatprep.subr.mxu0 0.0
        %932 = vmatpush1.msra.mxu0 0.0
        %933 = vmatprep.subr.mxu0 0.0
        %934 = vmatpush1.msra.mxu0 0.0
        %935 = vmatprep.subr.mxu0 0.0
        %936 = vmatpush1.msra.mxu0 0.0
        %937 = vmatprep.subr.mxu0 0.0
        %938 = vmatpush1.msra.mxu0 0.0
        %939 = vmatprep.subr.mxu0 0.0
        %940 = vmatpush1.msra.mxu0 0.0
        %941 = vmatprep.subr.mxu0 0.0
        %942 = vmatpush1.msra.mxu0 0.0
        %943 = vmatprep.subr.mxu0 0.0
        %944 = vmatpush1.msra.mxu0 0.0
        %945 = vmatprep.subr.mxu0 0.0
        %946 = vmatpush1.msra.mxu0 0.0
        %947 = vmatprep.subr.mxu0 0.0
        %948 = vmatpush1.msra.mxu0 0.0
        %949 = vmatprep.subr.mxu0 0.0
        %950 = vmatpush1.msra.mxu0 0.0
        %951 = vmatprep.subr.mxu0 0.0
        %952 = vmatpush1.msra.mxu0 0.0
        %953 = vmatprep.subr.mxu0 0.0
        %954 = vmatpush1.msra.mxu0 0.0
        %955 = vmatprep.subr.mxu0 0.0
        %956 = vmatpush1.msra.mxu0 0.0
        %957 = vmatprep.subr.mxu0 0.0
        %958 = vmatpush1.msra.mxu0 0.0
        %959 = vmatprep.subr.mxu0 0.0
        %960 = vmatpush1.msra.mxu0 0.0
        %961 = vmatprep.mubr.f32.mxu0 0.0
        %962 = vmatmul.mubr.f32.gmra.mrb[0].mxu0 %v708
        %v963 = vpop.f32.mrb[0].mxu0
        %v964 = vadd.f32 %v689, %v963
        %v965 = vpop.f32.mrb[0].mxu0
        %v966 = vadd.f32 %v689, %v965
        %967 = vmatprep.mubr.f32.mxu0 0.0
        %968 = vmatmul.mubr.f32.gmra.mrb[0].mxu0 %v711
        %v969 = vpop.f32.mrb[0].mxu0
        %v970 = vadd.f32 %v694, %v969
        %v971 = vpop.f32.mrb[0].mxu0
        %v972 = vadd.f32 %v694, %v971
        %973 = vmatprep.mubr.f32.mxu0 0.0
        %974 = vmatmul.mubr.f32.gmra.mrb[0].mxu0 %v714
        %v975 = vpop.f32.mrb[0].mxu0
        %v976 = vadd.f32 %v699, %v975
        %v977 = vpop.f32.mrb[0].mxu0
        %v978 = vadd.f32 %v699, %v977
        %979 = vmatprep.mubr.f32.mxu0 0.0
        %980 = vmatmul.mubr.f32.gmra.mrb[0].mxu0 %v717
        %v981 = vpop.f32.mrb[0].mxu0
        %v982 = vadd.f32 %v704, %v981
        %v983 = vpop.f32.mrb[0].mxu0
        %v984 = vadd.f32 %v704, %v983
        %985 = vdwg.mxu0
        %986 = vmatprep.subr.mxu0 %v653
        %987 = vmatpush1.msra.mxu0 %v652
        %988 = vmatprep.subr.mxu0 %v661
        %989 = vmatpush1.msra.mxu0 %v660
        %990 = vmatprep.subr.mxu0 %v669
        %991 = vmatpush1.msra.mxu0 %v668
        %992 = vmatprep.subr.mxu0 %v677
        %993 = vmatpush1.msra.mxu0 %v676
        %994 = vmatprep.subr.mxu0 0.0
        %995 = vmatpush1.msra.mxu0 0.0
        %996 = vmatprep.subr.mxu0 0.0
        %997 = vmatpush1.msra.mxu0 0.0
        %998 = vmatprep.subr.mxu0 0.0
        %999 = vmatpush1.msra.mxu0 0.0
        %1000 = vmatprep.subr.mxu0 0.0
        %1001 = vmatpush1.msra.mxu0 0.0
        %1002 = vmatprep.subr.mxu0 0.0
        %1003 = vmatpush1.msra.mxu0 0.0
        %1004 = vmatprep.subr.mxu0 0.0
        %1005 = vmatpush1.msra.mxu0 0.0
        %1006 = vmatprep.subr.mxu0 0.0
        %1007 = vmatpush1.msra.mxu0 0.0
        %1008 = vmatprep.subr.mxu0 0.0
        %1009 = vmatpush1.msra.mxu0 0.0
        %1010 = vmatprep.subr.mxu0 0.0
        %1011 = vmatpush1.msra.mxu0 0.0
        %1012 = vmatprep.subr.mxu0 0.0
        %1013 = vmatpush1.msra.mxu0 0.0
        %1014 = vmatprep.subr.mxu0 0.0
        %1015 = vmatpush1.msra.mxu0 0.0
        %1016 = vmatprep.subr.mxu0 0.0
        %1017 = vmatpush1.msra.mxu0 0.0
        %1018 = vmatprep.subr.mxu0 0.0
        %1019 = vmatpush1.msra.mxu0 0.0
        %1020 = vmatprep.subr.mxu0 0.0
        %1021 = vmatpush1.msra.mxu0 0.0
        %1022 = vmatprep.subr.mxu0 0.0
        %1023 = vmatpush1.msra.mxu0 0.0
        %1024 = vmatprep.subr.mxu0 0.0
        %1025 = vmatpush1.msra.mxu0 0.0
        %1026 = vmatprep.subr.mxu0 0.0
        %1027 = vmatpush1.msra.mxu0 0.0
        %1028 = vmatprep.subr.mxu0 0.0
        %1029 = vmatpush1.msra.mxu0 0.0
        %1030 = vmatprep.subr.mxu0 0.0
        %1031 = vmatpush1.msra.mxu0 0.0
        %1032 = vmatprep.subr.mxu0 0.0
        %1033 = vmatpush1.msra.mxu0 0.0
        %1034 = vmatprep.subr.mxu0 0.0
        %1035 = vmatpush1.msra.mxu0 0.0
        %1036 = vmatprep.subr.mxu0 0.0
        %1037 = vmatpush1.msra.mxu0 0.0
        %1038 = vmatprep.subr.mxu0 0.0
        %1039 = vmatpush1.msra.mxu0 0.0
        %1040 = vmatprep.subr.mxu0 0.0
        %1041 = vmatpush1.msra.mxu0 0.0
        %1042 = vmatprep.subr.mxu0 0.0
        %1043 = vmatpush1.msra.mxu0 0.0
        %1044 = vmatprep.subr.mxu0 0.0
        %1045 = vmatpush1.msra.mxu0 0.0
        %1046 = vmatprep.subr.mxu0 0.0
        %1047 = vmatpush1.msra.mxu0 0.0
        %1048 = vmatprep.subr.mxu0 0.0
        %1049 = vmatpush1.msra.mxu0 0.0
        %1050 = vmatprep.mubr.f32.mxu0 0.0
        %1051 = vmatmul.mubr.f32.gmra.mrb[0].mxu0 %v708
        %v1052 = vpop.f32.mrb[0].mxu0
        %v1053 = vadd.f32 %v689, %v1052
        %v1054 = vpop.f32.mrb[0].mxu0
        %v1055 = vadd.f32 %v689, %v1054
        %1056 = vmatprep.mubr.f32.mxu0 0.0
        %1057 = vmatmul.mubr.f32.gmra.mrb[0].mxu0 %v711
        %v1058 = vpop.f32.mrb[0].mxu0
        %v1059 = vadd.f32 %v694, %v1058
        %v1060 = vpop.f32.mrb[0].mxu0
        %v1061 = vadd.f32 %v694, %v1060
        %1062 = vmatprep.mubr.f32.mxu0 0.0
        %1063 = vmatmul.mubr.f32.gmra.mrb[0].mxu0 %v714
        %v1064 = vpop.f32.mrb[0].mxu0
        %v1065 = vadd.f32 %v699, %v1064
        %v1066 = vpop.f32.mrb[0].mxu0
        %v1067 = vadd.f32 %v699, %v1066
        %1068 = vmatprep.mubr.f32.mxu0 0.0
        %1069 = vmatmul.mubr.f32.gmra.mrb[0].mxu0 %v717
        %v1070 = vpop.f32.mrb[0].mxu0
        %v1071 = vadd.f32 %v704, %v1070
        %v1072 = vpop.f32.mrb[0].mxu0
        %v1073 = vadd.f32 %v704, %v1072
        %1074 = vdwg.mxu0
        %v1075 = vtanh.pop %v786
        %v1076 = vtanh.pop %v788
        %v1077 = vtanh.pop %v875
        %v1078 = vtanh.pop %v877
        %v1079 = vtanh.pop %v964
        %v1080 = vtanh.pop %v966
        %v1081 = vtanh.pop %v1053
        %v1082 = vtanh.pop %v1055
        %v1083 = vtanh.pop %v792
        %v1084 = vtanh.pop %v794
        %v1085 = vtanh.pop %v881
        %v1086 = vtanh.pop %v883
        %v1087 = vtanh.pop %v970
        %v1088 = vtanh.pop %v972
        %v1089 = vtanh.pop %v1059
        %v1090 = vtanh.pop %v1061
        %v1091 = vtanh.pop %v798
        %v1092 = vtanh.pop %v800
        %v1093 = vtanh.pop %v887
        %v1094 = vtanh.pop %v889
        %v1095 = vtanh.pop %v976
        %v1096 = vtanh.pop %v978
        %v1097 = vtanh.pop %v1065
        %v1098 = vtanh.pop %v1067
        %v1099 = vtanh.pop %v804
        %v1100 = vtanh.pop %v806
        %v1101 = vtanh.pop %v893
        %v1102 = vtanh.pop %v895
        %v1103 = vtanh.pop %v982
        %v1104 = vtanh.pop %v984
        %v1105 = vtanh.pop %v1071
        %v1106 = vtanh.pop %v1073
        %v1107 = vld [vmem:[%s5] sm:$0x1]
        %v1108 = vld [vmem:[#allocation2] sm:$0x1]
        %1110 = vset.pattern.permute.xlu0 0
        %1111 = vperm.xlu0 %1110, %v1108
        %v1112 = vpop.permute.xlu0 %1111
        %v1114 = vlaneseq
        %v1115 = vshrl.u32 %v1114, 7
        %v1116 = vsub.s32 0, %v1115
        %v1117 = vrot.slane %v1112, %v1116
        %v1119 = vsel %vm706, %v1107, 0
        %1121 = vmatprep.subr.mxu0 %v1076
        %1122 = vmatpush1.msra.mxu0 %v1075
        %1123 = vmatprep.subr.mxu0 %v1084
        %1124 = vmatpush1.msra.mxu0 %v1083
        %1125 = vmatprep.subr.mxu0 %v1092
        %1126 = vmatpush1.msra.mxu0 %v1091
        %1127 = vmatprep.subr.mxu0 %v1100
        %1128 = vmatpush1.msra.mxu0 %v1099
        %1129 = vmatprep.subr.mxu0 0.0
        %1130 = vmatpush1.msra.mxu0 0.0
        %1131 = vmatprep.subr.mxu0 0.0
        %1132 = vmatpush1.msra.mxu0 0.0
        %1133 = vmatprep.subr.mxu0 0.0
        %1134 = vmatpush1.msra.mxu0 0.0
        %1135 = vmatprep.subr.mxu0 0.0
        %1136 = vmatpush1.msra.mxu0 0.0
        %1137 = vmatprep.subr.mxu0 0.0
        %1138 = vmatpush1.msra.mxu0 0.0
        %1139 = vmatprep.subr.mxu0 0.0
        %1140 = vmatpush1.msra.mxu0 0.0
        %1141 = vmatprep.subr.mxu0 0.0
        %1142 = vmatpush1.msra.mxu0 0.0
        %1143 = vmatprep.subr.mxu0 0.0
        %1144 = vmatpush1.msra.mxu0 0.0
        %1145 = vmatprep.subr.mxu0 0.0
        %1146 = vmatpush1.msra.mxu0 0.0
        %1147 = vmatprep.subr.mxu0 0.0
        %1148 = vmatpush1.msra.mxu0 0.0
        %1149 = vmatprep.subr.mxu0 0.0
        %1150 = vmatpush1.msra.mxu0 0.0
        %1151 = vmatprep.subr.mxu0 0.0
        %1152 = vmatpush1.msra.mxu0 0.0
        %1153 = vmatprep.subr.mxu0 0.0
        %1154 = vmatpush1.msra.mxu0 0.0
        %1155 = vmatprep.subr.mxu0 0.0
        %1156 = vmatpush1.msra.mxu0 0.0
        %1157 = vmatprep.subr.mxu0 0.0
        %1158 = vmatpush1.msra.mxu0 0.0
        %1159 = vmatprep.subr.mxu0 0.0
        %1160 = vmatpush1.msra.mxu0 0.0
        %1161 = vmatprep.subr.mxu0 0.0
        %1162 = vmatpush1.msra.mxu0 0.0
        %1163 = vmatprep.subr.mxu0 0.0
        %1164 = vmatpush1.msra.mxu0 0.0
        %1165 = vmatprep.subr.mxu0 0.0
        %1166 = vmatpush1.msra.mxu0 0.0
        %1167 = vmatprep.subr.mxu0 0.0
        %1168 = vmatpush1.msra.mxu0 0.0
        %1169 = vmatprep.subr.mxu0 0.0
        %1170 = vmatpush1.msra.mxu0 0.0
        %1171 = vmatprep.subr.mxu0 0.0
        %1172 = vmatpush1.msra.mxu0 0.0
        %1173 = vmatprep.subr.mxu0 0.0
        %1174 = vmatpush1.msra.mxu0 0.0
        %1175 = vmatprep.subr.mxu0 0.0
        %1176 = vmatpush1.msra.mxu0 0.0
        %1177 = vmatprep.subr.mxu0 0.0
        %1178 = vmatpush1.msra.mxu0 0.0
        %1179 = vmatprep.subr.mxu0 0.0
        %1180 = vmatpush1.msra.mxu0 0.0
        %1181 = vmatprep.subr.mxu0 0.0
        %1182 = vmatpush1.msra.mxu0 0.0
        %1183 = vmatprep.subr.mxu0 0.0
        %1184 = vmatpush1.msra.mxu0 0.0
        %1185 = vmatprep.mubr.f32.mxu0 0.0
        %1186 = vmatmul.mubr.f32.gmra.mrb[0].mxu0 %v1119
        %v1187 = vpop.f32.mrb[0].mxu0
        %v1188 = vadd.f32 %v1117, %v1187
        %v1189 = vpop.f32.mrb[0].mxu0
        %v1190 = vadd.f32 %v1117, %v1189
        %1191 = vdwg.mxu0
        %1192 = vmatprep.subr.mxu0 %v1078
        %1193 = vmatpush1.msra.mxu0 %v1077
        %1194 = vmatprep.subr.mxu0 %v1086
        %1195 = vmatpush1.msra.mxu0 %v1085
        %1196 = vmatprep.subr.mxu0 %v1094
        %1197 = vmatpush1.msra.mxu0 %v1093
        %1198 = vmatprep.subr.mxu0 %v1102
        %1199 = vmatpush1.msra.mxu0 %v1101
        %1200 = vmatprep.subr.mxu0 0.0
        %1201 = vmatpush1.msra.mxu0 0.0
        %1202 = vmatprep.subr.mxu0 0.0
        %1203 = vmatpush1.msra.mxu0 0.0
        %1204 = vmatprep.subr.mxu0 0.0
        %1205 = vmatpush1.msra.mxu0 0.0
        %1206 = vmatprep.subr.mxu0 0.0
        %1207 = vmatpush1.msra.mxu0 0.0
        %1208 = vmatprep.subr.mxu0 0.0
        %1209 = vmatpush1.msra.mxu0 0.0
        %1210 = vmatprep.subr.mxu0 0.0
        %1211 = vmatpush1.msra.mxu0 0.0
        %1212 = vmatprep.subr.mxu0 0.0
        %1213 = vmatpush1.msra.mxu0 0.0
        %1214 = vmatprep.subr.mxu0 0.0
        %1215 = vmatpush1.msra.mxu0 0.0
        %1216 = vmatprep.subr.mxu0 0.0
        %1217 = vmatpush1.msra.mxu0 0.0
        %1218 = vmatprep.subr.mxu0 0.0
        %1219 = vmatpush1.msra.mxu0 0.0
        %1220 = vmatprep.subr.mxu0 0.0
        %1221 = vmatpush1.msra.mxu0 0.0
        %1222 = vmatprep.subr.mxu0 0.0
        %1223 = vmatpush1.msra.mxu0 0.0
        %1224 = vmatprep.subr.mxu0 0.0
        %1225 = vmatpush1.msra.mxu0 0.0
        %1226 = vmatprep.subr.mxu0 0.0
        %1227 = vmatpush1.msra.mxu0 0.0
        %1228 = vmatprep.subr.mxu0 0.0
        %1229 = vmatpush1.msra.mxu0 0.0
        %1230 = vmatprep.subr.mxu0 0.0
        %1231 = vmatpush1.msra.mxu0 0.0
        %1232 = vmatprep.subr.mxu0 0.0
        %1233 = vmatpush1.msra.mxu0 0.0
        %1234 = vmatprep.subr.mxu0 0.0
        %1235 = vmatpush1.msra.mxu0 0.0
        %1236 = vmatprep.subr.mxu0 0.0
        %1237 = vmatpush1.msra.mxu0 0.0
        %1238 = vmatprep.subr.mxu0 0.0
        %1239 = vmatpush1.msra.mxu0 0.0
        %1240 = vmatprep.subr.mxu0 0.0
        %1241 = vmatpush1.msra.mxu0 0.0
        %1242 = vmatprep.subr.mxu0 0.0
        %1243 = vmatpush1.msra.mxu0 0.0
        %1244 = vmatprep.subr.mxu0 0.0
        %1245 = vmatpush1.msra.mxu0 0.0
        %1246 = vmatprep.subr.mxu0 0.0
        %1247 = vmatpush1.msra.mxu0 0.0
        %1248 = vmatprep.subr.mxu0 0.0
        %1249 = vmatpush1.msra.mxu0 0.0
        %1250 = vmatprep.subr.mxu0 0.0
        %1251 = vmatpush1.msra.mxu0 0.0
        %1252 = vmatprep.subr.mxu0 0.0
        %1253 = vmatpush1.msra.mxu0 0.0
        %1254 = vmatprep.subr.mxu0 0.0
        %1255 = vmatpush1.msra.mxu0 0.0
        %1256 = vmatprep.mubr.f32.mxu0 0.0
        %1257 = vmatmul.mubr.f32.gmra.mrb[0].mxu0 %v1119
        %v1258 = vpop.f32.mrb[0].mxu0
        %v1259 = vadd.f32 %v1117, %v1258
        %v1260 = vpop.f32.mrb[0].mxu0
        %v1261 = vadd.f32 %v1117, %v1260
        %1262 = vdwg.mxu0
        %1263 = vmatprep.subr.mxu0 %v1080
        %1264 = vmatpush1.msra.mxu0 %v1079
        %1265 = vmatprep.subr.mxu0 %v1088
        %1266 = vmatpush1.msra.mxu0 %v1087
        %1267 = vmatprep.subr.mxu0 %v1096
        %1268 = vmatpush1.msra.mxu0 %v1095
        %1269 = vmatprep.subr.mxu0 %v1104
        %1270 = vmatpush1.msra.mxu0 %v1103
        %1271 = vmatprep.subr.mxu0 0.0
        %1272 = vmatpush1.msra.mxu0 0.0
        %1273 = vmatprep.subr.mxu0 0.0
        %1274 = vmatpush1.msra.mxu0 0.0
        %1275 = vmatprep.subr.mxu0 0.0
        %1276 = vmatpush1.msra.mxu0 0.0
        %1277 = vmatprep.subr.mxu0 0.0
        %1278 = vmatpush1.msra.mxu0 0.0
        %1279 = vmatprep.subr.mxu0 0.0
        %1280 = vmatpush1.msra.mxu0 0.0
        %1281 = vmatprep.subr.mxu0 0.0
        %1282 = vmatpush1.msra.mxu0 0.0
        %1283 = vmatprep.subr.mxu0 0.0
        %1284 = vmatpush1.msra.mxu0 0.0
        %1285 = vmatprep.subr.mxu0 0.0
        %1286 = vmatpush1.msra.mxu0 0.0
        %1287 = vmatprep.subr.mxu0 0.0
        %1288 = vmatpush1.msra.mxu0 0.0
        %1289 = vmatprep.subr.mxu0 0.0
        %1290 = vmatpush1.msra.mxu0 0.0
        %1291 = vmatprep.subr.mxu0 0.0
        %1292 = vmatpush1.msra.mxu0 0.0
        %1293 = vmatprep.subr.mxu0 0.0
        %1294 = vmatpush1.msra.mxu0 0.0
        %1295 = vmatprep.subr.mxu0 0.0
        %1296 = vmatpush1.msra.mxu0 0.0
        %1297 = vmatprep.subr.mxu0 0.0
        %1298 = vmatpush1.msra.mxu0 0.0
        %1299 = vmatprep.subr.mxu0 0.0
        %1300 = vmatpush1.msra.mxu0 0.0
        %1301 = vmatprep.subr.mxu0 0.0
        %1302 = vmatpush1.msra.mxu0 0.0
        %1303 = vmatprep.subr.mxu0 0.0
        %1304 = vmatpush1.msra.mxu0 0.0
        %1305 = vmatprep.subr.mxu0 0.0
        %1306 = vmatpush1.msra.mxu0 0.0
        %1307 = vmatprep.subr.mxu0 0.0
        %1308 = vmatpush1.msra.mxu0 0.0
        %1309 = vmatprep.subr.mxu0 0.0
        %1310 = vmatpush1.msra.mxu0 0.0
        %1311 = vmatprep.subr.mxu0 0.0
        %1312 = vmatpush1.msra.mxu0 0.0
        %1313 = vmatprep.subr.mxu0 0.0
        %1314 = vmatpush1.msra.mxu0 0.0
        %1315 = vmatprep.subr.mxu0 0.0
        %1316 = vmatpush1.msra.mxu0 0.0
        %1317 = vmatprep.subr.mxu0 0.0
        %1318 = vmatpush1.msra.mxu0 0.0
        %1319 = vmatprep.subr.mxu0 0.0
        %1320 = vmatpush1.msra.mxu0 0.0
        %1321 = vmatprep.subr.mxu0 0.0
        %1322 = vmatpush1.msra.mxu0 0.0
        %1323 = vmatprep.subr.mxu0 0.0
        %1324 = vmatpush1.msra.mxu0 0.0
        %1325 = vmatprep.subr.mxu0 0.0
        %1326 = vmatpush1.msra.mxu0 0.0
        %1327 = vmatprep.mubr.f32.mxu0 0.0
        %1328 = vmatmul.mubr.f32.gmra.mrb[0].mxu0 %v1119
        %v1329 = vpop.f32.mrb[0].mxu0
        %v1330 = vadd.f32 %v1117, %v1329
        %v1331 = vpop.f32.mrb[0].mxu0
        %v1332 = vadd.f32 %v1117, %v1331
        %1333 = vdwg.mxu0
        %1334 = vmatprep.subr.mxu0 %v1082
        %1335 = vmatpush1.msra.mxu0 %v1081
        %1336 = vmatprep.subr.mxu0 %v1090
        %1337 = vmatpush1.msra.mxu0 %v1089
        %1338 = vmatprep.subr.mxu0 %v1098
        %1339 = vmatpush1.msra.mxu0 %v1097
        %1340 = vmatprep.subr.mxu0 %v1106
        %1341 = vmatpush1.msra.mxu0 %v1105
        %1342 = vmatprep.subr.mxu0 0.0
        %1343 = vmatpush1.msra.mxu0 0.0
        %1344 = vmatprep.subr.mxu0 0.0
        %1345 = vmatpush1.msra.mxu0 0.0
        %1346 = vmatprep.subr.mxu0 0.0
        %1347 = vmatpush1.msra.mxu0 0.0
        %1348 = vmatprep.subr.mxu0 0.0
        %1349 = vmatpush1.msra.mxu0 0.0
        %1350 = vmatprep.subr.mxu0 0.0
        %1351 = vmatpush1.msra.mxu0 0.0
        %1352 = vmatprep.subr.mxu0 0.0
        %1353 = vmatpush1.msra.mxu0 0.0
        %1354 = vmatprep.subr.mxu0 0.0
        %1355 = vmatpush1.msra.mxu0 0.0
        %1356 = vmatprep.subr.mxu0 0.0
        %1357 = vmatpush1.msra.mxu0 0.0
        %1358 = vmatprep.subr.mxu0 0.0
        %1359 = vmatpush1.msra.mxu0 0.0
        %1360 = vmatprep.subr.mxu0 0.0
        %1361 = vmatpush1.msra.mxu0 0.0
        %1362 = vmatprep.subr.mxu0 0.0
        %1363 = vmatpush1.msra.mxu0 0.0
        %1364 = vmatprep.subr.mxu0 0.0
        %1365 = vmatpush1.msra.mxu0 0.0
        %1366 = vmatprep.subr.mxu0 0.0
        %1367 = vmatpush1.msra.mxu0 0.0
        %1368 = vmatprep.subr.mxu0 0.0
        %1369 = vmatpush1.msra.mxu0 0.0
        %1370 = vmatprep.subr.mxu0 0.0
        %1371 = vmatpush1.msra.mxu0 0.0
        %1372 = vmatprep.subr.mxu0 0.0
        %1373 = vmatpush1.msra.mxu0 0.0
        %1374 = vmatprep.subr.mxu0 0.0
        %1375 = vmatpush1.msra.mxu0 0.0
        %1376 = vmatprep.subr.mxu0 0.0
        %1377 = vmatpush1.msra.mxu0 0.0
        %1378 = vmatprep.subr.mxu0 0.0
        %1379 = vmatpush1.msra.mxu0 0.0
        %1380 = vmatprep.subr.mxu0 0.0
        %1381 = vmatpush1.msra.mxu0 0.0
        %1382 = vmatprep.subr.mxu0 0.0
        %1383 = vmatpush1.msra.mxu0 0.0
        %1384 = vmatprep.subr.mxu0 0.0
        %1385 = vmatpush1.msra.mxu0 0.0
        %1386 = vmatprep.subr.mxu0 0.0
        %1387 = vmatpush1.msra.mxu0 0.0
        %1388 = vmatprep.subr.mxu0 0.0
        %1389 = vmatpush1.msra.mxu0 0.0
        %1390 = vmatprep.subr.mxu0 0.0
        %1391 = vmatpush1.msra.mxu0 0.0
        %1392 = vmatprep.subr.mxu0 0.0
        %1393 = vmatpush1.msra.mxu0 0.0
        %1394 = vmatprep.subr.mxu0 0.0
        %1395 = vmatpush1.msra.mxu0 0.0
        %1396 = vmatprep.subr.mxu0 0.0
        %1397 = vmatpush1.msra.mxu0 0.0
        %1398 = vmatprep.mubr.f32.mxu0 0.0
        %1399 = vmatmul.mubr.f32.gmra.mrb[0].mxu0 %v1119
        %v1400 = vpop.f32.mrb[0].mxu0
        %v1401 = vadd.f32 %v1117, %v1400
        %v1402 = vpop.f32.mrb[0].mxu0
        %v1403 = vadd.f32 %v1117, %v1402
        %1404 = vdwg.mxu0
        %v1413 = vcombine.low %v1188, %v1190
        %v1414 = vcombine.low %v1259, %v1261
        %v1415 = vcombine.low %v1330, %v1332
        %v1416 = vcombine.low %v1401, %v1403
        %v1418 = vunpack.c.l.s4 1966171168
        %v1419 = vunpack.c.0.s8 %v1418
        %v1420 = vlaneseq
        %v1421 = vshrl.u32 %v1420, 7
        %v1422 = vsub.s32 %v1419, %v1421
        %v1423 = vrot.slane %v1413, %v1422
        %v1425 = vunpack.c.l.s4 1966171168
        %v1426 = vunpack.c.0.s8 %v1425
        %v1427 = vlaneseq
        %v1428 = vshrl.u32 %v1427, 7
        %v1429 = vsub.s32 %v1426, %v1428
        %v1430 = vrot.slane %v1414, %v1429
        %v1432 = vunpack.c.l.s4 1966171168
        %v1433 = vunpack.c.0.s8 %v1432
        %v1434 = vlaneseq
        %v1435 = vshrl.u32 %v1434, 7
        %v1436 = vsub.s32 %v1433, %v1435
        %v1437 = vrot.slane %v1415, %v1436
        %v1439 = vunpack.c.l.s4 1966171168
        %v1440 = vunpack.c.0.s8 %v1439
        %v1441 = vlaneseq
        %v1442 = vshrl.u32 %v1441, 7
        %v1443 = vsub.s32 %v1440, %v1442
        %v1444 = vrot.slane %v1416, %v1443
        %v1445 = vcombine.low %v1423, %v1430
        %v1446 = vcombine.low %v1437, %v1444
        %v1448 = vunpack.c.l.s4 1966171168
        %v1449 = vunpack.c.0.s8 %v1448
        %v1450 = vlaneseq
        %v1451 = vshrl.u32 %v1450, 7
        %v1452 = vsub.s32 %v1449, %v1451
        %v1453 = vrot.slane %v1445, %v1452
        %v1455 = vunpack.c.l.s4 1966171168
        %v1456 = vunpack.c.0.s8 %v1455
        %v1457 = vlaneseq
        %v1458 = vshrl.u32 %v1457, 7
        %v1459 = vsub.s32 %v1456, %v1458
        %v1460 = vrot.slane %v1446, %v1459
        %v1461 = vcombine.low %v1453, %v1460
        %1463 = vst [vmem:[%s286] sm:$0xff] %v1461
        %s1464 = sand.u32 %s183, 1
        %s1465 = scalar_lea.sflag [#allocation4], %s1464
        %s1466 = sand.u32 %s183, 1
        %s1467 = smul.addr %s1466, 8
        %s1468 = scalar_lea.vmem [#allocation3], %s1467
        // Predicated region
        $region49: #{tpu_custom_call.1} parent=47 // pred_check
          %p1469 = pneg %p193
        $region50: #{tpu_custom_call.1} parent=47 // pred_check_branch
          %1471 = sbr.rel (%p1469) target = $region52
        $region51: #{tpu_custom_call.1} parent=47 // pred_region
          %s1472 = smul.u32 8, %s23
          %s1473 = ssub.s32 20, %s1472
          %p1474 = scmp.lt.s32.totalorder %s1473, 8
          %s1475 = scalar_select %p1474, %s1473, 8
          %s1476 = smul.u32 16, %s1475
          %s1478 = ssub.s32 128, %s1476
          %1479 = vsyncadd %s1465, %s1478
          %p1480 = scmp.ne.s32.totalorder 0, %s1476
          %s1481 = smul.addr %s1472, 16
          %s1482 = scalar_lea.hbm %s7, %s1481
          %s1483 = sshll.u32 %s1475, 4
          %s1484 = sshll.u32 %s1468, 4
          %s1485 = int_to_ptr.vmem [resolvable:$true] %s1484
          %1487 = dma.vmem_to_hbm [thread:$0]  (%p1480), %s1485, %s1483, %s1482, %s1465
        $region52: #{tpu_custom_call.1} parent=47 // pred_fallthru
          _
      $region48: #{tpu_custom_call.1} parent=5 // pred_fallthru
        _
      %p1488 = scmp.le.s32.totalorder 2, %s18
      // Predicated region
      $region53: #{tpu_custom_call.1} parent=5 // pred_check
        %p1489 = pneg %p1488
      $region54: #{tpu_custom_call.1} parent=5 // pred_check_branch
        %1491 = sbr.rel (%p1489) target = $region56
      $region55: #{tpu_custom_call.1} parent=5 // pred_region
        %s1492 = ssub.s32 %s18, 2
        // Predicated region
        $region57: #{tpu_custom_call.1} parent=55 // pred_check
          %p1493 = pneg %p199
        $region58: #{tpu_custom_call.1} parent=55 // pred_check_branch
          %1495 = sbr.rel (%p1493) target = $region60
        $region59: #{tpu_custom_call.1} parent=55 // pred_region
          %s1496 = sand.u32 %s184, 1
          %s1497 = scalar_lea.sflag [#allocation4], %s1496
          %s1498 = sand.u32 %s184, 1
          %s1499 = smul.addr %s1498, 8
          %s1500 = scalar_lea.vmem [#allocation3], %s1499
          %1501 = dma.done %s1497, 128
        $region60: #{tpu_custom_call.1} parent=55 // pred_fallthru
          _
      $region56: #{tpu_custom_call.1} parent=5 // pred_fallthru
        _
    $region6: #{tpu_custom_call.1} parent=1 // loop_footer
      %s22 = sadd.s32 1, %s18
    $region7: #{tpu_custom_call.1} parent=1 // loop_footer_branch
      %17 = sbr.rel target = $region3
    $region8: #{tpu_custom_call.1} parent=1 // loop_exit
      _
    %1502 = vsyncpa [#allocation4], 1
    %s1503 = scalar_lea.sflag [#allocation4], 1
    %1504 = vsyncpa %s1503, 1

</llo_original>
